<compile_context>
chip_gen: v6e
topology: v6e:2x2x1
jax: 0.10.0
libtpu: 0.0.40
codegen_flags: <defaults>
</compile_context>

<pallas_src>
import functools

import jax
import jax.numpy as jnp
from jax.experimental import pallas as pl
from jax.experimental.pallas import tpu as pltpu


# ----------------------------------------------------------------------------
# Kernel-side math (shared by both kernels).
# ----------------------------------------------------------------------------
def _giou_loss_from_packed(x, eps):
    """x: (8, TR, 128) f32 slab; rows 0-3 gt xyxy, rows 4-7 pr xyxy.

    Returns per-box loss (TR, 128) = 1 - giou.
    """
    gx1, gy1, gx2, gy2 = x[0], x[1], x[2], x[3]
    px1, py1, px2, py2 = x[4], x[5], x[6], x[7]

    gt_area = (gx2 - gx1) * (gy2 - gy1)
    pr_area = (px2 - px1) * (py2 - py1)

    # Intersection (matches torch: wh = (rb - lt + eps).clamp(min=0)).
    iw = jnp.maximum(jnp.minimum(gx2, px2) - jnp.maximum(gx1, px1) + eps, 0.0)
    ih = jnp.maximum(jnp.minimum(gy2, py2) - jnp.maximum(gy1, py1) + eps, 0.0)
    inter = iw * ih
    union = gt_area + pr_area - inter

    # Smallest enclosing box.
    ew = jnp.maximum(jnp.maximum(gx2, px2) - jnp.minimum(gx1, px1) + eps, 0.0)
    eh = jnp.maximum(jnp.maximum(gy2, py2) - jnp.minimum(gy1, py1) + eps, 0.0)
    enclosure = ew * eh

    # loss = 1 - giou = 2 - inter/union - union/enclosure
    #      = 2 - (inter*enclosure + union*union) / (union*enclosure)
    # One EUP reciprocal instead of two divides.
    r = pl.reciprocal(union * enclosure, approx=False)
    return 2.0 - (inter * enclosure + union * union) * r


def _giou_loss_kernel(packed_ref, o_ref, *, eps):
    """reduction='none': write the per-box loss tile (TR, 128)."""
    x = packed_ref[...].astype(jnp.float32)
    o_ref[...] = _giou_loss_from_packed(x, eps).astype(o_ref.dtype)


def _giou_partial_sum_kernel(packed_ref, o_ref, *, eps, n_valid, tr):
    """reduction='mean'/'sum': write one masked (1, 128) partial sum per step."""
    x = packed_ref[...].astype(jnp.float32)
    loss = _giou_loss_from_packed(x, eps)                        # (TR, 128)

    # Mask out zero-padded boxes (flat box index >= n_valid).
    row = jax.lax.broadcasted_iota(jnp.int32, (tr, 128), 0)
    lane = jax.lax.broadcasted_iota(jnp.int32, (tr, 128), 1)
    idx = (pl.program_id(0) * tr + row) * 128 + lane
    loss = jnp.where(idx < n_valid, loss, 0.0)

    o_ref[0] = jnp.sum(loss, axis=0, keepdims=True)              # (1, 128)


# ----------------------------------------------------------------------------
# Host-side wrapper.
# ----------------------------------------------------------------------------
def _select_row_tile(num_rows: int) -> int:
    """Row tile TR (sublane dim of the (8, TR, 128) block); multiple of 8.

    Block bytes = TR * 4 KiB.  TR_MAX = 512 -> 2 MiB block, 4 MiB
    double-buffered: well under v5e's 16 MiB scoped-VMEM default.  For
    medium N we split into >= 2 tiles so v7x's two TensorCores both get a
    "parallel" grid step.
    """
    tr_max = 512
    r8 = pl.cdiv(num_rows, 8) * 8
    if r8 <= 16:
        return r8
    if r8 <= tr_max:
        return pl.cdiv(pl.cdiv(r8, 2), 8) * 8
    return tr_max


def giou_loss(pr_bboxes, gt_bboxes, *, eps: float = 1e-5, reduction: str = "mean"):
    """Pallas implementation of GIOULoss.forward(pr_bboxes, gt_bboxes)."""
    assert pr_bboxes.ndim == 2 and pr_bboxes.shape[-1] == 4
    assert pr_bboxes.shape == gt_bboxes.shape
    n = pr_bboxes.shape[0]
    assert n >= 1

    num_rows = pl.cdiv(n, 128)
    tr = _select_row_tile(num_rows)
    r_pad = pl.cdiv(num_rows, tr) * tr
    n_pad = r_pad * 128
    grid = (r_pad // tr,)

    # Pack both inputs into one (8, r_pad, 128) slab: rows 0-3 gt, rows 4-7 pr.
    # Zero padding; padded boxes are masked (reduction path) / sliced ('none').
    packed = jnp.concatenate([gt_bboxes, pr_bboxes], axis=1)     # (N, 8)
    if n_pad != n:
        packed = jnp.pad(packed, ((0, n_pad - n), (0, 0)))
    packed = packed.T.reshape(8, r_pad, 128)                      # native dtype

    in_spec = pl.BlockSpec((8, tr, 128), lambda j: (0, j, 0))
    cparams = pltpu.CompilerParams(dimension_semantics=("parallel",))

    if reduction in ("mean", "sum"):
        kernel = functools.partial(
            _giou_partial_sum_kernel, eps=float(eps), n_valid=n, tr=tr)
        partials = pl.pallas_call(
            kernel,
            out_shape=jax.ShapeDtypeStruct((grid[0], 1, 128), jnp.float32),
            grid=grid,
            in_specs=[in_spec],
            out_specs=pl.BlockSpec((1, 1, 128), lambda j: (j, 0, 0)),
            compiler_params=cparams,
        )(packed)
        total = jnp.sum(partials)
        return total / n if reduction == "mean" else total

    # reduction == 'none'
    kernel = functools.partial(_giou_loss_kernel, eps=float(eps))
    per_box = pl.pallas_call(
        kernel,
        out_shape=jax.ShapeDtypeStruct((r_pad, 128), jnp.float32),
        grid=grid,
        in_specs=[in_spec],
        out_specs=pl.BlockSpec((tr, 128), lambda j: (j, 0)),
        compiler_params=cparams,
    )(packed)
    return per_box.reshape(-1)[:n]


class GIOULoss:
    """JAX/Pallas port of the PyTorch GIOULoss module."""

    def __init__(self, eps: float = 1e-5, reduction: str = "mean"):
        self.eps = eps
        self.reduction = reduction

    def __call__(self, pr_bboxes, gt_bboxes):
        return giou_loss(pr_bboxes, gt_bboxes,
                         eps=self.eps, reduction=self.reduction)


# ----------------------------------------------------------------------------
# Pure-JAX reference (mirrors the PyTorch code with the intended `union`).
# ----------------------------------------------------------------------------
def _reference_giou_loss(pr_bboxes, gt_bboxes, eps=1e-5, reduction="mean"):
    gt_area = (gt_bboxes[:, 2] - gt_bboxes[:, 0]) * (gt_bboxes[:, 3] - gt_bboxes[:, 1])
    pr_area = (pr_bboxes[:, 2] - pr_bboxes[:, 0]) * (pr_bboxes[:, 3] - pr_bboxes[:, 1])
    lt = jnp.maximum(gt_bboxes[:, :2], pr_bboxes[:, :2])
    rb = jnp.minimum(gt_bboxes[:, 2:], pr_bboxes[:, 2:])
    wh = jnp.maximum(rb - lt + eps, 0.0)
    inter = wh[:, 0] * wh[:, 1]
    union = gt_area + pr_area - inter
    iou = inter / union
    lt_e = jnp.minimum(gt_bboxes[:, :2], pr_bboxes[:, :2])
    rb_e = jnp.maximum(gt_bboxes[:, 2:], pr_bboxes[:, 2:])
    wh_e = jnp.maximum(rb_e - lt_e + eps, 0.0)
    enclosure = wh_e[:, 0] * wh_e[:, 1]
    giou = iou - (enclosure - union) / enclosure
    loss = 1.0 - giou
    if reduction == "mean":
        return loss.mean()
    if reduction == "sum":
        return loss.sum()
    return loss


if __name__ == "__main__":
    key = jax.random.PRNGKey(0)
    k1, k2 = jax.random.split(key)

    def make_boxes(k, n):
        pts = jax.random.uniform(k, (n, 4), dtype=jnp.float32) * 10.0
        x1 = jnp.minimum(pts[:, 0], pts[:, 2])
        x2 = jnp.maximum(pts[:, 0], pts[:, 2])
        y1 = jnp.minimum(pts[:, 1], pts[:, 3])
        y2 = jnp.maximum(pts[:, 1], pts[:, 3])
        return jnp.stack([x1, y1, x2, y2], axis=1)

    n = 256
    pr = make_boxes(k1, n)
    gt = make_boxes(k2, n)

    # Default 'mean' reduction (fused in-kernel partial sums).
    loss = jax.block_until_ready(GIOULoss(eps=1e-5, reduction="mean")(pr, gt))
    ref = _reference_giou_loss(pr, gt, eps=1e-5, reduction="mean")
    assert loss.shape == ()
    assert jnp.allclose(loss, ref, atol=1e-5, rtol=1e-5)

    # 'sum' reduction.
    loss_sum = jax.block_until_ready(GIOULoss(reduction="sum")(pr, gt))
    ref_sum = _reference_giou_loss(pr, gt, reduction="sum")
    assert jnp.allclose(loss_sum, ref_sum, atol=1e-4, rtol=1e-5)

    # Per-box ('none') reduction path.
    loss_none = jax.block_until_ready(GIOULoss(reduction="none")(pr, gt))
    ref_none = _reference_giou_loss(pr, gt, reduction="none")
    assert loss_none.shape == (n,)
    assert jnp.allclose(loss_none, ref_none, atol=1e-5, rtol=1e-5)

    print("KERNEL_OK")
</pallas_src>

<mosaic_0001>
module attributes {stable_mosaic.version = 11 : i64} {
  func.func @_giou_partial_sum_kernel(%arg0: i32, %arg1: memref<8x8x128xf32, #tpu.memory_space<vmem>>, %arg2: memref<1x1x128xf32, #tpu.memory_space<vmem>>) attributes {dimension_semantics = [#tpu.dimension_semantics<parallel>], iteration_bounds = array<i64: 1>, scalar_prefetch = 0 : i64, scratch_operands = 0 : i64, tpu.core_type = #tpu.core_type<tc>, window_params = [{transform_indices = @transform_0, window_bounds = array<i64: 8, 8, 128>}, {transform_indices = @transform_1, window_bounds = array<i64: 1, 1, 128>}]} {
    %c0 = arith.constant 0 : index
    %c0_0 = arith.constant 0 : index
    %c0_1 = arith.constant 0 : index
    %0 = vector.load %arg1[%c0, %c0_0, %c0_1] : memref<8x8x128xf32, #tpu.memory_space<vmem>>, vector<8x8x128xf32>
    %1 = vector.extract_strided_slice %0 {offsets = [0, 0, 0], sizes = [1, 8, 128], strides = [1, 1, 1]} : vector<8x8x128xf32> to vector<1x8x128xf32>
    %2 = vector.shape_cast %1 : vector<1x8x128xf32> to vector<8x128xf32>
    %3 = vector.extract_strided_slice %0 {offsets = [1, 0, 0], sizes = [1, 8, 128], strides = [1, 1, 1]} : vector<8x8x128xf32> to vector<1x8x128xf32>
    %4 = vector.shape_cast %3 : vector<1x8x128xf32> to vector<8x128xf32>
    %5 = vector.extract_strided_slice %0 {offsets = [2, 0, 0], sizes = [1, 8, 128], strides = [1, 1, 1]} : vector<8x8x128xf32> to vector<1x8x128xf32>
    %6 = vector.shape_cast %5 : vector<1x8x128xf32> to vector<8x128xf32>
    %7 = vector.extract_strided_slice %0 {offsets = [3, 0, 0], sizes = [1, 8, 128], strides = [1, 1, 1]} : vector<8x8x128xf32> to vector<1x8x128xf32>
    %8 = vector.shape_cast %7 : vector<1x8x128xf32> to vector<8x128xf32>
    %9 = vector.extract_strided_slice %0 {offsets = [4, 0, 0], sizes = [1, 8, 128], strides = [1, 1, 1]} : vector<8x8x128xf32> to vector<1x8x128xf32>
    %10 = vector.shape_cast %9 : vector<1x8x128xf32> to vector<8x128xf32>
    %11 = vector.extract_strided_slice %0 {offsets = [5, 0, 0], sizes = [1, 8, 128], strides = [1, 1, 1]} : vector<8x8x128xf32> to vector<1x8x128xf32>
    %12 = vector.shape_cast %11 : vector<1x8x128xf32> to vector<8x128xf32>
    %13 = vector.extract_strided_slice %0 {offsets = [6, 0, 0], sizes = [1, 8, 128], strides = [1, 1, 1]} : vector<8x8x128xf32> to vector<1x8x128xf32>
    %14 = vector.shape_cast %13 : vector<1x8x128xf32> to vector<8x128xf32>
    %15 = vector.extract_strided_slice %0 {offsets = [7, 0, 0], sizes = [1, 8, 128], strides = [1, 1, 1]} : vector<8x8x128xf32> to vector<1x8x128xf32>
    %16 = vector.shape_cast %15 : vector<1x8x128xf32> to vector<8x128xf32>
    %17 = arith.subf %6, %2 : vector<8x128xf32>
    %18 = arith.subf %8, %4 : vector<8x128xf32>
    %19 = arith.mulf %17, %18 : vector<8x128xf32>
    %20 = arith.subf %14, %10 : vector<8x128xf32>
    %21 = arith.subf %16, %12 : vector<8x128xf32>
    %22 = arith.mulf %20, %21 : vector<8x128xf32>
    %23 = arith.minimumf %6, %14 : vector<8x128xf32>
    %24 = arith.maximumf %2, %10 : vector<8x128xf32>
    %25 = arith.subf %23, %24 : vector<8x128xf32>
    %cst = arith.constant 9.99999974E-6 : f32
    %26 = vector.broadcast %cst : f32 to vector<8x128xf32>
    %27 = arith.addf %25, %26 : vector<8x128xf32>
    %cst_2 = arith.constant 0.000000e+00 : f32
    %28 = vector.broadcast %cst_2 : f32 to vector<8x128xf32>
    %29 = arith.maximumf %27, %28 : vector<8x128xf32>
    %30 = arith.minimumf %8, %16 : vector<8x128xf32>
    %31 = arith.maximumf %4, %12 : vector<8x128xf32>
    %32 = arith.subf %30, %31 : vector<8x128xf32>
    %cst_3 = arith.constant 9.99999974E-6 : f32
    %33 = vector.broadcast %cst_3 : f32 to vector<8x128xf32>
    %34 = arith.addf %32, %33 : vector<8x128xf32>
    %cst_4 = arith.constant 0.000000e+00 : f32
    %35 = vector.broadcast %cst_4 : f32 to vector<8x128xf32>
    %36 = arith.maximumf %34, %35 : vector<8x128xf32>
    %37 = arith.mulf %29, %36 : vector<8x128xf32>
    %38 = arith.addf %19, %22 : vector<8x128xf32>
    %39 = arith.subf %38, %37 : vector<8x128xf32>
    %40 = arith.maximumf %6, %14 : vector<8x128xf32>
    %41 = arith.minimumf %2, %10 : vector<8x128xf32>
    %42 = arith.subf %40, %41 : vector<8x128xf32>
    %cst_5 = arith.constant 9.99999974E-6 : f32
    %43 = vector.broadcast %cst_5 : f32 to vector<8x128xf32>
    %44 = arith.addf %42, %43 : vector<8x128xf32>
    %cst_6 = arith.constant 0.000000e+00 : f32
    %45 = vector.broadcast %cst_6 : f32 to vector<8x128xf32>
    %46 = arith.maximumf %44, %45 : vector<8x128xf32>
    %47 = arith.maximumf %8, %16 : vector<8x128xf32>
    %48 = arith.minimumf %4, %12 : vector<8x128xf32>
    %49 = arith.subf %47, %48 : vector<8x128xf32>
    %cst_7 = arith.constant 9.99999974E-6 : f32
    %50 = vector.broadcast %cst_7 : f32 to vector<8x128xf32>
    %51 = arith.addf %49, %50 : vector<8x128xf32>
    %cst_8 = arith.constant 0.000000e+00 : f32
    %52 = vector.broadcast %cst_8 : f32 to vector<8x128xf32>
    %53 = arith.maximumf %51, %52 : vector<8x128xf32>
    %54 = arith.mulf %46, %53 : vector<8x128xf32>
    %55 = arith.mulf %39, %54 : vector<8x128xf32>
    %56 = tpu.reciprocal %55 : vector<8x128xf32> -> vector<8x128xf32>
    %57 = arith.mulf %37, %54 : vector<8x128xf32>
    %58 = arith.mulf %39, %39 : vector<8x128xf32>
    %59 = arith.addf %57, %58 : vector<8x128xf32>
    %60 = arith.mulf %59, %56 : vector<8x128xf32>
    %cst_9 = arith.constant 2.000000e+00 : f32
    %61 = vector.broadcast %cst_9 : f32 to vector<8x128xf32>
    %62 = arith.subf %61, %60 : vector<8x128xf32>
    %63 = tpu.iota {dimensions = array<i32: 0>} : vector<8x128xi32>
    %64 = tpu.iota {dimensions = array<i32: 1>} : vector<8x128xi32>
    %c8_i32 = arith.constant 8 : i32
    %65 = arith.muli %arg0, %c8_i32 : i32
    %66 = vector.broadcast %65 : i32 to vector<8x128xi32>
    %67 = arith.addi %66, %63 : vector<8x128xi32>
    %c128_i32 = arith.constant 128 : i32
    %68 = vector.broadcast %c128_i32 : i32 to vector<8x128xi32>
    %69 = arith.muli %67, %68 : vector<8x128xi32>
    %70 = arith.addi %69, %64 : vector<8x128xi32>
    %c256_i32 = arith.constant 256 : i32
    %71 = vector.broadcast %c256_i32 : i32 to vector<8x128xi32>
    %72 = arith.cmpi slt, %70, %71 : vector<8x128xi32>
    %cst_10 = arith.constant 0.000000e+00 : f32
    %73 = vector.broadcast %cst_10 : f32 to vector<8x128xf32>
    %74 = arith.select %72, %62, %73 : vector<8x128xi1>, vector<8x128xf32>
    %cst_11 = arith.constant dense<0.000000e+00> : vector<128xf32>
    %75 = vector.multi_reduction <add>, %74, %cst_11 [0] : vector<8x128xf32> to vector<128xf32>
    %76 = vector.shape_cast %75 : vector<128xf32> to vector<1x128xf32>
    %c0_12 = arith.constant 0 : index
    %c0_13 = arith.constant 0 : index
    %c0_14 = arith.constant 0 : index
    %77 = vector.load %arg2[%c0_12, %c0_13, %c0_14] : memref<1x1x128xf32, #tpu.memory_space<vmem>>, vector<1x1x128xf32>
    %78 = vector.shape_cast %77 : vector<1x1x128xf32> to vector<1x128xf32>
    %79 = vector.shape_cast %76 : vector<1x128xf32> to vector<1x1x128xf32>
    tpu.vector_store %arg2[%c0_12, %c0_13, %c0_14], %79 {strides = array<i32>} : memref<1x1x128xf32, #tpu.memory_space<vmem>>, vector<1x1x128xf32>,
    return
  }
  func.func @transform_0(%arg0: i32) -> (i32, i32, i32) {
    %c0_i32 = arith.constant 0 : i32
    %c0_i32_0 = arith.constant 0 : i32
    %c0_i32_1 = arith.constant 0 : i32
    return %c0_i32, %arg0, %c0_i32_0 : i32, i32, i32
  }
  func.func @transform_1(%arg0: i32) -> (i32, i32, i32) {
    %c0_i32 = arith.constant 0 : i32
    %c0_i32_0 = arith.constant 0 : i32
    %c0_i32_1 = arith.constant 0 : i32
    return %arg0, %c0_i32, %c0_i32_0 : i32, i32, i32
  }
}

</mosaic_0001>

<llo_original>
// kernel: tpu_custom_call.1
$region0: #{tpu_custom_call.1}
  #allocation0 [shape = 'u32[]', space=smem, size = 0x4, offset = 0x4, fixed_abs, tag = 'smem constant byte address 0x4 - core index']
  #allocation1 [shape = 'u32[144,128]{1,0:T(1,128)}', space=vmem, size = 0x12000, scoped, tag = 'internal scratch']
  %s0 = inlined_call_operand.hbm [shape: f32[8,8,128], index: 0, kind: input, shape index: {}]
  %s1 = inlined_call_operand.hbm [shape: f32[1,1,128], index: 1, kind: output, shape index: {}]
  %s2 = sld [smem:[#allocation0]]
  $region18: #{tpu_custom_call.1} parent=0
    _
  %s4 = ssub.s32 1, %s2
  %s5 = scalar_select 0, %s4, %s2
  $region1: #{tpu_custom_call.1} parent=0
    #allocation2 [shape = 'u8[32768]{0}', space=vmem, size = 0x8000, scoped, tag = 'input window, operand 0, single buffered']
    #allocation3 [shape = 's32[1]{0}', space=sflag, size = 0x4, scoped, tag = 'scoped memory for tpu_custom_call.1']
    #allocation4 [shape = 's32[1]{0}', space=sflag, size = 0x4, scoped, tag = 'scoped memory for tpu_custom_call.1']
    #allocation5 [shape = 'u8[512]{0}', space=vmem, size = 0x400, scoped, tag = 'output window, operand 0, single buffered']
    %6 = vsyncpa [#allocation3], 0
    %7 = vsyncpa [#allocation4], 0
    // Predicated region
    $region2: #{tpu_custom_call.1} parent=1 // pred_check
      _
    $region3: #{tpu_custom_call.1} parent=1 // pred_check_branch
      %9 = sbr.rel (0) target = $region5
    $region4: #{tpu_custom_call.1} parent=1 // pred_region
      %s11 = ssub.s32 1024, 1024
      %12 = vsyncadd [#allocation3], %s11
      %s13 = sshll.u32 [#allocation2], 4
      %s14 = int_to_ptr.vmem [resolvable:$true] %s13
      %19 = dma.hbm_to_vmem [thread:$0]  %s0, 1024, %s14, [#allocation3], 128, 128, 8
    $region5: #{tpu_custom_call.1} parent=1 // pred_fallthru
      _
    // Predicated region
    $region6: #{tpu_custom_call.1} parent=1 // pred_check
      _
    $region7: #{tpu_custom_call.1} parent=1 // pred_check_branch
      %21 = sbr.rel (0) target = $region9
    $region8: #{tpu_custom_call.1} parent=1 // pred_region
      %22 = dma.done [#allocation3], 1024
    $region9: #{tpu_custom_call.1} parent=1 // pred_fallthru
      _
    %v23 = vld [vmem:[#allocation2] sm:$0xff]
    %v24 = vld [vmem:[#allocation2 + $0x8] sm:$0xff]
    %v25 = vld [vmem:[#allocation2 + $0x10] sm:$0xff]
    %v26 = vld [vmem:[#allocation2 + $0x18] sm:$0xff]
    %v27 = vld [vmem:[#allocation2 + $0x20] sm:$0xff]
    %v28 = vld [vmem:[#allocation2 + $0x28] sm:$0xff]
    %v29 = vld [vmem:[#allocation2 + $0x30] sm:$0xff]
    %v30 = vld [vmem:[#allocation2 + $0x38] sm:$0xff]
    %v31 = vsub.f32 %v25, %v23
    %v32 = vsub.f32 %v26, %v24
    %v33 = vmul.f32 %v31, %v32
    %v34 = vsub.f32 %v29, %v27
    %v35 = vsub.f32 %v30, %v28
    %v36 = vmul.f32 %v34, %v35
    %v37 = vmin.f32 %v25, %v29
    %v38 = vmax.f32 %v23, %v27
    %v39 = vsub.f32 %v37, %v38
    %v40 = vadd.f32 %v39, 1e-05
    %v41 = vmax.f32 %v40, 0.0
    %v42 = vmin.f32 %v26, %v30
    %v43 = vmax.f32 %v24, %v28
    %v44 = vsub.f32 %v42, %v43
    %v45 = vadd.f32 %v44, 1e-05
    %v46 = vmax.f32 %v45, 0.0
    %v47 = vmul.f32 %v41, %v46
    %v48 = vadd.f32 %v33, %v36
    %v49 = vsub.f32 %v48, %v47
    %v50 = vmax.f32 %v25, %v29
    %v51 = vmin.f32 %v23, %v27
    %v52 = vsub.f32 %v50, %v51
    %v53 = vadd.f32 %v52, 1e-05
    %v54 = vmax.f32 %v53, 0.0
    %v55 = vmax.f32 %v26, %v30
    %v56 = vmin.f32 %v24, %v28
    %v57 = vsub.f32 %v55, %v56
    %v58 = vadd.f32 %v57, 1e-05
    %v59 = vmax.f32 %v58, 0.0
    %v60 = vmul.f32 %v54, %v59
    %v61 = vmul.f32 %v49, %v60
    %v62 = vrcp.pop %v61
    %v63 = vmul.f32 %v47, %v60
    %v64 = vmul.f32 %v49, %v49
    %v65 = vadd.f32 %v63, %v64
    %v66 = vmul.f32 %v65, %v62
    %v67 = vsub.f32 2.0, %v66
    %v68 = vlaneseq
    %v69 = vshrl.u32 %v68, 7
    %v70 = vlaneseq
    %v71 = vand.u32 %v70, 127
    %s72 = smul.u32 0, 8
    %v73 = vstv %s72
    %v74 = vadd.s32 %v73, %v69
    %v75 = vmul.u32 %v74, 128
    %v76 = vadd.s32 %v75, %v71
    %vm77 = vcmp.lt.s32.totalorder %v76, 256
    %v78 = vsel %vm77, %v67, 0.0
    %v79 = vrot.slane %v78, 4
    %v80 = vadd.f32 %v78, %v79
    %v81 = vrot.slane %v80, 2
    %v82 = vadd.f32 %v80, %v81
    %v83 = vrot.slane %v82, 1
    %v84 = vadd.f32 %v82, %v83
    %85 = vst [vmem:[#allocation5] sm:$0x1] %v84
    // Predicated region
    $region10: #{tpu_custom_call.1} parent=1 // pred_check
      _
    $region11: #{tpu_custom_call.1} parent=1 // pred_check_branch
      %87 = sbr.rel (0) target = $region13
    $region12: #{tpu_custom_call.1} parent=1 // pred_region
      %s89 = ssub.s32 16, 16
      %90 = vsyncadd [#allocation4], %s89
      %s92 = sshll.u32 [#allocation5], 4
      %s93 = int_to_ptr.vmem [resolvable:$true] %s92
      %95 = dma.vmem_to_hbm [thread:$0]  %s93, 16, %s1, [#allocation4]
    $region13: #{tpu_custom_call.1} parent=1 // pred_fallthru
      _
    // Predicated region
    $region14: #{tpu_custom_call.1} parent=1 // pred_check
      _
    $region15: #{tpu_custom_call.1} parent=1 // pred_check_branch
      %97 = sbr.rel (0) target = $region17
    $region16: #{tpu_custom_call.1} parent=1 // pred_region
      %98 = dma.done [#allocation4], 16
    $region17: #{tpu_custom_call.1} parent=1 // pred_fallthru
      _
    %99 = vsyncpa [#allocation3], 1
    %100 = vsyncpa [#allocation4], 1

</llo_original>
